<compile_context>
chip_gen: v5e
topology: v5e:2x2
jax: 0.10.0
libtpu: 0.0.40
codegen_flags: <defaults>
</compile_context>

<pallas_src>
import functools

import jax
import jax.numpy as jnp
from jax.experimental import pallas as pl
from jax.experimental.pallas import tpu as pltpu


# ----------------------------- Pallas kernel --------------------------------

def _mlp_block_kernel(x_ref, w_ref, b_ref, o_ref, *, depth):
    """Applies `depth` fused (h @ W_d + b_d -> ReLU) layers to one row tile.

    x_ref: (tile_m, H)      activation row tile (VMEM)
    w_ref: (depth, H, H)    stacked weights, layout (in, out)  (VMEM, resident)
    b_ref: (depth, 1, H)    stacked biases                      (VMEM, resident)
    o_ref: (tile_m, H)      output row tile
    """
    h = x_ref[...]                                   # (tile_m, H), f32
    for d in range(depth):                           # static, unrolled
        h = jnp.dot(h, w_ref[d], preferred_element_type=jnp.float32)
        h = h + b_ref[d]
        # TODO(synk): the PyTorch module takes `activation` as a constructor
        # argument; nn.ReLU() is assumed here.
        h = jnp.maximum(h, 0.0)
    o_ref[...] = h.astype(o_ref.dtype)


# ------------------------------- wrapper -------------------------------------

def mlp_block_forward(x, weights, biases, *, tile_m_cap=128):
    """Fused MLP_Block forward.

    x:       (..., H)
    weights: (depth, H, H)   W[d] is (in, out), i.e. PyTorch weight transposed.
    biases:  (depth, H)
    """
    H = x.shape[-1]
    lead = x.shape[:-1]
    depth = weights.shape[0]

    x2 = x.reshape(-1, H)
    M = x2.shape[0]

    # Pad rows at most once, at the network boundary (never per layer).
    if M <= tile_m_cap:
        tile_m = max(8, ((M + 7) // 8) * 8)          # legal sublane multiple
        Mp = tile_m                                  # grid of 1, no pipelining waste
    else:
        tile_m = tile_m_cap
        Mp = ((M + tile_m - 1) // tile_m) * tile_m
    if Mp != M:
        x2 = jnp.pad(x2, ((0, Mp - M), (0, 0)))

    b2 = biases.reshape(depth, 1, H)

    out = pl.pallas_call(
        functools.partial(_mlp_block_kernel, depth=depth),
        out_shape=jax.ShapeDtypeStruct((Mp, H), x.dtype),
        grid=(Mp // tile_m,),
        in_specs=[
            pl.BlockSpec((tile_m, H), lambda i: (i, 0)),
            # Constant block index -> weight/bias stacks stay resident in VMEM
            # across all row tiles (no re-DMA between grid steps).
            pl.BlockSpec((depth, H, H), lambda i: (0, 0, 0)),
            pl.BlockSpec((depth, 1, H), lambda i: (0, 0, 0)),
        ],
        out_specs=pl.BlockSpec((tile_m, H), lambda i: (i, 0)),
        compiler_params=pltpu.CompilerParams(
            dimension_semantics=("parallel",)),      # megacore when grid > 1
    )(x2, weights, b2)

    if Mp != M:
        out = out[:M]
    return out.reshape(*lead, H)


# --------------------------- pure-JAX reference ------------------------------

def mlp_block_reference(x, weights, biases):
    h = x
    for d in range(weights.shape[0]):
        h = jnp.maximum(jnp.matmul(h, weights[d]) + biases[d], 0.0)
    return h


# ----------------------------------- main ------------------------------------

if __name__ == "__main__":
    hidden_size = 32
    depth = 3
    batch, seq = 2, 8

    key = jax.random.PRNGKey(0)
    kx, kw, kb = jax.random.split(key, 3)

    x = jax.random.normal(kx, (batch, seq, hidden_size), jnp.float32)

    # PyTorch-style uniform(-1/sqrt(H), 1/sqrt(H)) init; weights stored (in, out).
    bound = 1.0 / (hidden_size ** 0.5)
    weights = jax.random.uniform(kw, (depth, hidden_size, hidden_size),
                                 jnp.float32, -bound, bound)
    biases = jax.random.uniform(kb, (depth, hidden_size),
                                jnp.float32, -bound, bound)

    fwd = jax.jit(mlp_block_forward)
    out = fwd(x, weights, biases)
    jax.block_until_ready(out)
    assert out.shape == (batch, seq, hidden_size), out.shape

    ref = mlp_block_reference(x, weights, biases)
    assert jnp.allclose(out, ref, atol=1e-5, rtol=1e-5), \
        float(jnp.max(jnp.abs(out - ref)))

    print("KERNEL_OK")
</pallas_src>

<mosaic_0001>
module attributes {stable_mosaic.version = 11 : i64} {
  func.func @_mlp_block_kernel(%arg0: i32, %arg1: memref<16x32xf32, #tpu.memory_space<vmem>>, %arg2: memref<3x32x32xf32, #tpu.memory_space<vmem>>, %arg3: memref<3x1x32xf32, #tpu.memory_space<vmem>>, %arg4: memref<16x32xf32, #tpu.memory_space<vmem>>) attributes {dimension_semantics = [#tpu.dimension_semantics<parallel>], iteration_bounds = array<i64: 1>, scalar_prefetch = 0 : i64, scratch_operands = 0 : i64, tpu.core_type = #tpu.core_type<tc>, window_params = [{transform_indices = @transform_0, window_bounds = array<i64: 16, 32>}, {pipeline_mode = #tpu.pipeline_mode<synchronous>, transform_indices = @transform_1, window_bounds = array<i64: 3, 32, 32>}, {pipeline_mode = #tpu.pipeline_mode<synchronous>, transform_indices = @transform_2, window_bounds = array<i64: 3, 1, 32>}, {transform_indices = @transform_3, window_bounds = array<i64: 16, 32>}]} {
    %c0 = arith.constant 0 : index
    %c0_0 = arith.constant 0 : index
    %0 = vector.load %arg1[%c0, %c0_0] : memref<16x32xf32, #tpu.memory_space<vmem>>, vector<16x32xf32>
    %c0_1 = arith.constant 0 : index
    %c0_2 = arith.constant 0 : index
    %c0_3 = arith.constant 0 : index
    %1 = vector.load %arg2[%c0_1, %c0_2, %c0_3] : memref<3x32x32xf32, #tpu.memory_space<vmem>>, vector<1x32x32xf32>
    %2 = vector.shape_cast %1 : vector<1x32x32xf32> to vector<32x32xf32>
    %cst = arith.constant dense<0.000000e+00> : vector<16x32xf32>
    %3 = tpu.matmul %0, %2, %cst {dimension_numbers = #tpu.dot_dimension_numbers<[1], [0], [0], [1], [0, 0, 1, 1], [], []>} : vector<16x32xf32>, vector<32x32xf32>, vector<16x32xf32> -> vector<16x32xf32>
    %c0_4 = arith.constant 0 : index
    %c0_5 = arith.constant 0 : index
    %c0_6 = arith.constant 0 : index
    %4 = vector.load %arg3[%c0_4, %c0_5, %c0_6] : memref<3x1x32xf32, #tpu.memory_space<vmem>>, vector<1x1x32xf32>
    %5 = vector.shape_cast %4 : vector<1x1x32xf32> to vector<1x32xf32>
    %6 = vector.broadcast %5 : vector<1x32xf32> to vector<16x32xf32>
    %7 = arith.addf %3, %6 : vector<16x32xf32>
    %cst_7 = arith.constant 0.000000e+00 : f32
    %8 = vector.broadcast %cst_7 : f32 to vector<16x32xf32>
    %9 = arith.maximumf %7, %8 : vector<16x32xf32>
    %c1 = arith.constant 1 : index
    %c0_8 = arith.constant 0 : index
    %c0_9 = arith.constant 0 : index
    %10 = vector.load %arg2[%c1, %c0_8, %c0_9] : memref<3x32x32xf32, #tpu.memory_space<vmem>>, vector<1x32x32xf32>
    %11 = vector.shape_cast %10 : vector<1x32x32xf32> to vector<32x32xf32>
    %cst_10 = arith.constant dense<0.000000e+00> : vector<16x32xf32>
    %12 = tpu.matmul %9, %11, %cst_10 {dimension_numbers = #tpu.dot_dimension_numbers<[1], [0], [0], [1], [0, 0, 1, 1], [], []>} : vector<16x32xf32>, vector<32x32xf32>, vector<16x32xf32> -> vector<16x32xf32>
    %c1_11 = arith.constant 1 : index
    %c0_12 = arith.constant 0 : index
    %c0_13 = arith.constant 0 : index
    %13 = vector.load %arg3[%c1_11, %c0_12, %c0_13] : memref<3x1x32xf32, #tpu.memory_space<vmem>>, vector<1x1x32xf32>
    %14 = vector.shape_cast %13 : vector<1x1x32xf32> to vector<1x32xf32>
    %15 = vector.broadcast %14 : vector<1x32xf32> to vector<16x32xf32>
    %16 = arith.addf %12, %15 : vector<16x32xf32>
    %cst_14 = arith.constant 0.000000e+00 : f32
    %17 = vector.broadcast %cst_14 : f32 to vector<16x32xf32>
    %18 = arith.maximumf %16, %17 : vector<16x32xf32>
    %c2 = arith.constant 2 : index
    %c0_15 = arith.constant 0 : index
    %c0_16 = arith.constant 0 : index
    %19 = vector.load %arg2[%c2, %c0_15, %c0_16] : memref<3x32x32xf32, #tpu.memory_space<vmem>>, vector<1x32x32xf32>
    %20 = vector.shape_cast %19 : vector<1x32x32xf32> to vector<32x32xf32>
    %cst_17 = arith.constant dense<0.000000e+00> : vector<16x32xf32>
    %21 = tpu.matmul %18, %20, %cst_17 {dimension_numbers = #tpu.dot_dimension_numbers<[1], [0], [0], [1], [0, 0, 1, 1], [], []>} : vector<16x32xf32>, vector<32x32xf32>, vector<16x32xf32> -> vector<16x32xf32>
    %c2_18 = arith.constant 2 : index
    %c0_19 = arith.constant 0 : index
    %c0_20 = arith.constant 0 : index
    %22 = vector.load %arg3[%c2_18, %c0_19, %c0_20] : memref<3x1x32xf32, #tpu.memory_space<vmem>>, vector<1x1x32xf32>
    %23 = vector.shape_cast %22 : vector<1x1x32xf32> to vector<1x32xf32>
    %24 = vector.broadcast %23 : vector<1x32xf32> to vector<16x32xf32>
    %25 = arith.addf %21, %24 : vector<16x32xf32>
    %cst_21 = arith.constant 0.000000e+00 : f32
    %26 = vector.broadcast %cst_21 : f32 to vector<16x32xf32>
    %27 = arith.maximumf %25, %26 : vector<16x32xf32>
    %c0_22 = arith.constant 0 : index
    %c0_23 = arith.constant 0 : index
    %28 = vector.load %arg4[%c0_22, %c0_23] : memref<16x32xf32, #tpu.memory_space<vmem>>, vector<16x32xf32>
    tpu.vector_store %arg4[%c0_22, %c0_23], %27 {strides = array<i32>} : memref<16x32xf32, #tpu.memory_space<vmem>>, vector<16x32xf32>,
    return
  }
  func.func @transform_0(%arg0: i32) -> (i32, i32) {
    %c0_i32 = arith.constant 0 : i32
    %c0_i32_0 = arith.constant 0 : i32
    return %arg0, %c0_i32 : i32, i32
  }
  func.func @transform_1(%arg0: i32) -> (i32, i32, i32) {
    %c0_i32 = arith.constant 0 : i32
    %c0_i32_0 = arith.constant 0 : i32
    %c0_i32_1 = arith.constant 0 : i32
    %c0_i32_2 = arith.constant 0 : i32
    return %c0_i32, %c0_i32_0, %c0_i32_1 : i32, i32, i32
  }
  func.func @transform_2(%arg0: i32) -> (i32, i32, i32) {
    %c0_i32 = arith.constant 0 : i32
    %c0_i32_0 = arith.constant 0 : i32
    %c0_i32_1 = arith.constant 0 : i32
    %c0_i32_2 = arith.constant 0 : i32
    return %c0_i32, %c0_i32_0, %c0_i32_1 : i32, i32, i32
  }
  func.func @transform_3(%arg0: i32) -> (i32, i32) {
    %c0_i32 = arith.constant 0 : i32
    %c0_i32_0 = arith.constant 0 : i32
    return %arg0, %c0_i32 : i32, i32
  }
}

</mosaic_0001>

<llo_original>
// kernel: mlp_block_forward.1
$region0: #{mlp_block_forward.1}
  #allocation0 [shape = 'u32[]', space=smem, size = 0x4, offset = 0x4, fixed_abs, tag = 'smem constant byte address 0x4 - core index']
  #allocation1 [shape = 'u32[72,128]{1,0:T(1,128)}', space=vmem, size = 0x9000, scoped, tag = 'internal scratch']
  %s0 = inlined_call_operand.hbm [shape: f32[16,32], index: 0, kind: input, shape index: {}]
  %s1 = inlined_call_operand.hbm [shape: f32[3,32,32], index: 1, kind: input, shape index: {}]
  %s2 = inlined_call_operand.vmem [shape: f32[3,1,32], index: 2, kind: input, shape index: {}]
  %s3 = inlined_call_operand.hbm [shape: f32[16,32], index: 3, kind: output, shape index: {}]
  %s4 = sld [smem:[#allocation0]]
  $region30: #{mlp_block_forward.1} parent=0
    _
  %s6 = ssub.s32 1, %s4
  %s7 = scalar_select 0, %s6, %s4
  $region1: #{mlp_block_forward.1} parent=0
    #allocation2 [shape = 'u8[8192]{0}', space=vmem, size = 0x2000, scoped, tag = 'input window, operand 0, single buffered']
    #allocation3 [shape = 's32[1]{0}', space=sflag, size = 0x4, scoped, tag = 'scoped memory for mlp_block_forward.1']
    #allocation4 [shape = 's32[1]{0}', space=sflag, size = 0x4, scoped, tag = 'scoped memory for mlp_block_forward.1']
    #allocation5 [shape = 'u8[49152]{0}', space=vmem, size = 0xc000, scoped, tag = 'input window, operand 1, single buffered']
    #allocation6 [shape = 's32[1]{0}', space=sflag, size = 0x4, scoped, tag = 'scoped memory for mlp_block_forward.1']
    #allocation7 [shape = 'u8[8192]{0}', space=vmem, size = 0x2000, scoped, tag = 'output window, operand 0, single buffered']
    %8 = vsyncpa [#allocation3], 0
    %9 = vsyncpa [#allocation6], 0
    %10 = vsyncpa [#allocation4], 0
    // Predicated region
    $region2: #{mlp_block_forward.1} parent=1 // pred_check
      _
    $region3: #{mlp_block_forward.1} parent=1 // pred_check_branch
      %12 = sbr.rel (0) target = $region5
    $region4: #{mlp_block_forward.1} parent=1 // pred_region
      %14 = vsyncadd [#allocation3], 0
      %s15 = sshll.u32 %s0, 4
      %s16 = int_to_ptr.hbm [resolvable:$true] %s15
      %s17 = sshll.u32 [#allocation2], 4
      %s18 = int_to_ptr.vmem [resolvable:$true] %s17
      %23 = dma.hbm_to_vmem [thread:$0]  %s16, 256, %s18, [#allocation3], 128, 128, 8
    $region5: #{mlp_block_forward.1} parent=1 // pred_fallthru
      _
    // Predicated region
    $region6: #{mlp_block_forward.1} parent=1 // pred_check
      _
    $region7: #{mlp_block_forward.1} parent=1 // pred_check_branch
      %25 = sbr.rel (0) target = $region9
    $region8: #{mlp_block_forward.1} parent=1 // pred_region
      %27 = vsyncadd [#allocation6], 0
      %s28 = sshll.u32 %s1, 4
      %s29 = int_to_ptr.hbm [resolvable:$true] %s28
      %s30 = sshll.u32 [#allocation5], 4
      %s31 = int_to_ptr.vmem [resolvable:$true] %s30
      %36 = dma.hbm_to_vmem [thread:$0]  %s29, 1536, %s31, [#allocation6], 128, 128, 8
    $region9: #{mlp_block_forward.1} parent=1 // pred_fallthru
      _
    // Predicated region
    $region10: #{mlp_block_forward.1} parent=1 // pred_check
      _
    $region11: #{mlp_block_forward.1} parent=1 // pred_check_branch
      %38 = sbr.rel (0) target = $region13
    $region12: #{mlp_block_forward.1} parent=1 // pred_region
      _
    $region13: #{mlp_block_forward.1} parent=1 // pred_fallthru
      _
    // Predicated region
    $region14: #{mlp_block_forward.1} parent=1 // pred_check
      _
    $region15: #{mlp_block_forward.1} parent=1 // pred_check_branch
      %40 = sbr.rel (0) target = $region17
    $region16: #{mlp_block_forward.1} parent=1 // pred_region
      %42 = dma.done [#allocation3], 256
    $region17: #{mlp_block_forward.1} parent=1 // pred_fallthru
      _
    // Predicated region
    $region18: #{mlp_block_forward.1} parent=1 // pred_check
      _
    $region19: #{mlp_block_forward.1} parent=1 // pred_check_branch
      %44 = sbr.rel (0) target = $region21
    $region20: #{mlp_block_forward.1} parent=1 // pred_region
      %46 = dma.done [#allocation6], 1536
    $region21: #{mlp_block_forward.1} parent=1 // pred_fallthru
      _
    %v47 = vld [vmem:[#allocation2] sm:$0xff]
    %v48 = vld [vmem:[#allocation2 + $0x8] sm:$0xff]
    %v49 = vld [vmem:[#allocation5] sm:$0xff]
    %v50 = vld [vmem:[#allocation5 + $0x8] sm:$0xff]
    %v51 = vld [vmem:[#allocation5 + $0x10] sm:$0xff]
    %v52 = vld [vmem:[#allocation5 + $0x18] sm:$0xff]
    %v53 = vld [vmem:[%s2] sm:$0x1]
    %v55 = vperm.slane %v53, 0
    %vm57 = vcmask 261120
    %v59 = vsel %vm57, %v47, 0
    %v62 = vsel %vm57, %v48, 0
    %64 = vmatpush.msra.mxu0 0.0
    %65 = vmatpush.msra.mxu0 0.0
    %66 = vmatpush.msra.mxu0 0.0
    %67 = vmatpush.msra.mxu0 0.0
    %68 = vmatpush.msra.mxu0 0.0
    %69 = vmatpush.msra.mxu0 0.0
    %70 = vmatpush.msra.mxu0 0.0
    %71 = vmatpush.msra.mxu0 0.0
    %72 = vmatpush.msra.mxu0 0.0
    %73 = vmatpush.msra.mxu0 0.0
    %74 = vmatpush.msra.mxu0 0.0
    %75 = vmatpush.msra.mxu0 0.0
    %76 = vmatpush.msra.mxu0 %v52
    %77 = vmatpush.msra.mxu0 %v51
    %78 = vmatpush.msra.mxu0 %v50
    %79 = vmatpush.msra.mxu0 %v49
    %80 = vmatmul.f32.gmra.mxu0 %v59
    %v81 = vpop.f32.mrf.mxu0
    %v82 = vadd.f32 %v55, %v81
    %83 = vmatmul.f32.gmra.mxu0 %v62
    %v84 = vpop.f32.mrf.mxu0
    %v85 = vadd.f32 %v55, %v84
    %86 = vdwg.mxu0
    %v87 = vmax.f32 %v82, 0.0
    %v88 = vmax.f32 %v85, 0.0
    %s89 = scalar_lea.vmem [#allocation5], 32
    %v90 = vld [vmem:[%s89] sm:$0xff]
    %v91 = vld [vmem:[%s89 + $0x8] sm:$0xff]
    %v92 = vld [vmem:[%s89 + $0x10] sm:$0xff]
    %v93 = vld [vmem:[%s89 + $0x18] sm:$0xff]
    %s94 = scalar_lea.vmem %s2, 1
    %v95 = vld [vmem:[%s94] sm:$0x1]
    %v97 = vperm.slane %v95, 0
    %v100 = vsel %vm57, %v87, 0
    %v103 = vsel %vm57, %v88, 0
    %105 = vmatpush.msra.mxu0 0.0
    %106 = vmatpush.msra.mxu0 0.0
    %107 = vmatpush.msra.mxu0 0.0
    %108 = vmatpush.msra.mxu0 0.0
    %109 = vmatpush.msra.mxu0 0.0
    %110 = vmatpush.msra.mxu0 0.0
    %111 = vmatpush.msra.mxu0 0.0
    %112 = vmatpush.msra.mxu0 0.0
    %113 = vmatpush.msra.mxu0 0.0
    %114 = vmatpush.msra.mxu0 0.0
    %115 = vmatpush.msra.mxu0 0.0
    %116 = vmatpush.msra.mxu0 0.0
    %117 = vmatpush.msra.mxu0 %v93
    %118 = vmatpush.msra.mxu0 %v92
    %119 = vmatpush.msra.mxu0 %v91
    %120 = vmatpush.msra.mxu0 %v90
    %121 = vmatmul.f32.gmra.mxu0 %v100
    %v122 = vpop.f32.mrf.mxu0
    %v123 = vadd.f32 %v97, %v122
    %124 = vmatmul.f32.gmra.mxu0 %v103
    %v125 = vpop.f32.mrf.mxu0
    %v126 = vadd.f32 %v97, %v125
    %127 = vdwg.mxu0
    %v128 = vmax.f32 %v123, 0.0
    %v129 = vmax.f32 %v126, 0.0
    %s130 = scalar_lea.vmem [#allocation5], 64
    %v131 = vld [vmem:[%s130] sm:$0xff]
    %v132 = vld [vmem:[%s130 + $0x8] sm:$0xff]
    %v133 = vld [vmem:[%s130 + $0x10] sm:$0xff]
    %v134 = vld [vmem:[%s130 + $0x18] sm:$0xff]
    %s135 = scalar_lea.vmem %s2, 2
    %v136 = vld [vmem:[%s135] sm:$0x1]
    %v138 = vperm.slane %v136, 0
    %v141 = vsel %vm57, %v128, 0
    %v144 = vsel %vm57, %v129, 0
    %146 = vmatpush.msra.mxu0 0.0
    %147 = vmatpush.msra.mxu0 0.0
    %148 = vmatpush.msra.mxu0 0.0
    %149 = vmatpush.msra.mxu0 0.0
    %150 = vmatpush.msra.mxu0 0.0
    %151 = vmatpush.msra.mxu0 0.0
    %152 = vmatpush.msra.mxu0 0.0
    %153 = vmatpush.msra.mxu0 0.0
    %154 = vmatpush.msra.mxu0 0.0
    %155 = vmatpush.msra.mxu0 0.0
    %156 = vmatpush.msra.mxu0 0.0
    %157 = vmatpush.msra.mxu0 0.0
    %158 = vmatpush.msra.mxu0 %v134
    %159 = vmatpush.msra.mxu0 %v133
    %160 = vmatpush.msra.mxu0 %v132
    %161 = vmatpush.msra.mxu0 %v131
    %162 = vmatmul.f32.gmra.mxu0 %v141
    %v163 = vpop.f32.mrf.mxu0
    %v164 = vadd.f32 %v138, %v163
    %165 = vmatmul.f32.gmra.mxu0 %v144
    %v166 = vpop.f32.mrf.mxu0
    %v167 = vadd.f32 %v138, %v166
    %168 = vdwg.mxu0
    %v169 = vmax.f32 %v164, 0.0
    %v170 = vmax.f32 %v167, 0.0
    %171 = vst.msk [vmem:[#allocation7] sm:$0xff] %vm57, %v169
    %172 = vst.msk [vmem:[#allocation7 + $0x8] sm:$0xff] %vm57, %v170
    // Predicated region
    $region22: #{mlp_block_forward.1} parent=1 // pred_check
      _
    $region23: #{mlp_block_forward.1} parent=1 // pred_check_branch
      %174 = sbr.rel (0) target = $region25
    $region24: #{mlp_block_forward.1} parent=1 // pred_region
      %176 = vsyncadd [#allocation4], 0
      %s177 = sshll.u32 [#allocation7], 4
      %s178 = int_to_ptr.vmem [resolvable:$true] %s177
      %s179 = sshll.u32 %s3, 4
      %s180 = int_to_ptr.hbm [resolvable:$true] %s179
      %185 = dma.vmem_to_hbm [thread:$0]  %s178, 256, %s180, [#allocation4], 128, 128, 8
    $region25: #{mlp_block_forward.1} parent=1 // pred_fallthru
      _
    // Predicated region
    $region26: #{mlp_block_forward.1} parent=1 // pred_check
      _
    $region27: #{mlp_block_forward.1} parent=1 // pred_check_branch
      %187 = sbr.rel (0) target = $region29
    $region28: #{mlp_block_forward.1} parent=1 // pred_region
      %189 = dma.done [#allocation4], 256
    $region29: #{mlp_block_forward.1} parent=1 // pred_fallthru
      _
    %190 = vsyncpa [#allocation3], 1
    %191 = vsyncpa [#allocation6], 1
    %192 = vsyncpa [#allocation4], 1

</llo_original>
